<compile_context>
chip_gen: v7x
topology: tpu7x:2x2x1
jax: 0.10.0
libtpu: 0.0.40
codegen_flags: <defaults>
</compile_context>

<pallas_src>
import jax
import jax.numpy as jnp
import numpy as np
from jax.experimental import pallas as pl
from jax.experimental.pallas import tpu as pltpu


def _round_up(x, m):
    return (x + m - 1) // m * m


def _decoders_kernel(x_ref, y1_ref, y2_ref, y3_ref, w1_ref, b1_ref,
                     wds_ref, wdm_ref, wdl_ref,
                     p1_ref, p2_ref, p3_ref):
    """Fused per-(batch, T-tile) decoder math for all three kernel lengths.

    x_ref : (1, C, tT) bf16     shared input features
    y*_ref: (1, H, tT) bf16     masks / embeddings
    w1_ref: (3, H, C)  bf16     stacked 1x1 conv weights
    b1_ref: (3, H, 1)  f32      stacked 1x1 conv biases
    wd*_ref: (H, K_i)  bf16     conv-transpose weights (out_channels=1 squeezed)
    p*_ref: (1, K_i, tT) f32    per-tap, per-frame contributions (lane-dense T)
    """
    x = x_ref[0]                                           # (C, tT) bf16

    def one_decoder(y_ref, idx, wd_ref, p_ref):
        w1 = w1_ref[idx]                                   # (H, C)  bf16
        b1 = b1_ref[idx]                                   # (H, 1)  f32
        m = jnp.dot(w1, x, preferred_element_type=jnp.float32) + b1
        m = jnp.maximum(m, 0.0)                            # ReLU (f32)
        z = (y_ref[0].astype(jnp.float32) * m).astype(jnp.bfloat16)   # (H, tT)
        # contract hidden dim H: (H, K_i) x (H, tT) -> (K_i, tT), T on lanes.
        p = jax.lax.dot_general(
            wd_ref[...], z, (((0,), (0,)), ((), ())),
            preferred_element_type=jnp.float32)
        p_ref[0] = p

    one_decoder(y1_ref, 0, wds_ref, p1_ref)
    one_decoder(y2_ref, 1, wdm_ref, p2_ref)
    one_decoder(y3_ref, 2, wdl_ref, p3_ref)


def _overlap_add(p, T, stride, bd):
    """ConvTranspose1d scatter: S[b, t*stride + k] += p[b, k, t], bias added once.

    Uses only K // stride shifted slab-adds (each slab of width `stride`)
    instead of K strided scatters.
    """
    B, K, _ = p.shape
    p = p[:, :, :T]                                        # drop T padding
    L = (T - 1) * stride + K
    S = jnp.full((B, L), bd, dtype=jnp.float32)
    G = K // stride
    if G > 0:
        # taps k = g*stride + r, r in [0, stride): contiguous slab per g.
        slab = p[:, : G * stride, :].reshape(B, G, stride, T)
        slab = jnp.transpose(slab, (0, 1, 3, 2)).reshape(B, G, T * stride)
        for g in range(G):
            S = S.at[:, g * stride: g * stride + T * stride].add(slab[:, g])
    for k in range(G * stride, K):     # remainder taps if stride does not divide K
        S = S.at[:, k: k + (T - 1) * stride + 1: stride].add(p[:, k, :])
    return S


def decoders_block(x, Y1, Y2, Y3, p_short, p_middle, p_long, stride):
    """Equivalent of DecodersBlock.forward, all three decoders fused in one kernel."""
    B, C, T = x.shape
    H = p_short["w1"].shape[0]
    Ks = p_short["wd"].shape[1]
    Km = p_middle["wd"].shape[1]
    Kl = p_long["wd"].shape[1]

    # --- T tiling: lane axis a multiple of 128, sized so double-buffered blocks
    #     fit a VMEM budget that is safe on v5e / v6e / v7x (64 MiB physical).
    budget = 24 << 20
    tT = _round_up(min(max(T, 1), 1024), 128)
    while tT > 128 and 2 * ((C + 3 * H) * tT * 2 + (Ks + Km + Kl) * tT * 4) > budget:
        tT -= 128
    T_pad = _round_up(T, tT)
    pad = T_pad - T

    def pad_cast(a):
        return jnp.pad(a, ((0, 0), (0, 0), (0, pad))).astype(jnp.bfloat16)

    xb, y1b, y2b, y3b = pad_cast(x), pad_cast(Y1), pad_cast(Y2), pad_cast(Y3)
    w1_all = jnp.stack([p_short["w1"], p_middle["w1"], p_long["w1"]]).astype(jnp.bfloat16)
    b1_all = jnp.stack([p_short["b1"], p_middle["b1"], p_long["b1"]]).astype(jnp.float32)
    wds = p_short["wd"].astype(jnp.bfloat16)
    wdm = p_middle["wd"].astype(jnp.bfloat16)
    wdl = p_long["wd"].astype(jnp.bfloat16)

    blk_bytes = 2 * ((C + 3 * H) * tT * 2 + (Ks + Km + Kl) * tT * 4)
    wt_bytes = w1_all.size * 2 + b1_all.size * 4 + (wds.size + wdm.size + wdl.size) * 2
    vmem_limit = int(min(max(32 << 20, 2 * (blk_bytes + wt_bytes)), 48 << 20))

    grid = (B, T_pad // tT)
    p1, p2, p3 = pl.pallas_call(
        _decoders_kernel,
        out_shape=(jax.ShapeDtypeStruct((B, Ks, T_pad), jnp.float32),
                   jax.ShapeDtypeStruct((B, Km, T_pad), jnp.float32),
                   jax.ShapeDtypeStruct((B, Kl, T_pad), jnp.float32)),
        grid=grid,
        in_specs=[
            pl.BlockSpec((1, C, tT), lambda b, t: (b, 0, t)),
            pl.BlockSpec((1, H, tT), lambda b, t: (b, 0, t)),
            pl.BlockSpec((1, H, tT), lambda b, t: (b, 0, t)),
            pl.BlockSpec((1, H, tT), lambda b, t: (b, 0, t)),
            pl.BlockSpec((3, H, C), lambda b, t: (0, 0, 0)),   # weights pinned
            pl.BlockSpec((3, H, 1), lambda b, t: (0, 0, 0)),
            pl.BlockSpec((H, Ks), lambda b, t: (0, 0)),
            pl.BlockSpec((H, Km), lambda b, t: (0, 0)),
            pl.BlockSpec((H, Kl), lambda b, t: (0, 0)),
        ],
        out_specs=(
            pl.BlockSpec((1, Ks, tT), lambda b, t: (b, 0, t)),
            pl.BlockSpec((1, Km, tT), lambda b, t: (b, 0, t)),
            pl.BlockSpec((1, Kl, tT), lambda b, t: (b, 0, t)),
        ),
        compiler_params=pltpu.CompilerParams(
            dimension_semantics=("parallel", "parallel"),
            vmem_limit_bytes=vmem_limit,
        ),
    )(xb, y1b, y2b, y3b, w1_all, b1_all, wds, wdm, wdl)

    s1 = _overlap_add(p1, T, stride, p_short["bd"])
    s2 = _overlap_add(p2, T, stride, p_middle["bd"])
    s3 = _overlap_add(p3, T, stride, p_long["bd"])
    # Match torch's S.squeeze(): drops the batch dim when B == 1.
    return jnp.squeeze(s1), jnp.squeeze(s2), jnp.squeeze(s3)


def _init_decoder_params(key, in_channels, hidden_dim, kernel_size):
    k1, k2, k3, k4 = jax.random.split(key, 4)
    return dict(
        w1=jax.random.normal(k1, (hidden_dim, in_channels), jnp.float32) * 0.1,
        b1=jax.random.normal(k2, (hidden_dim, 1), jnp.float32) * 0.1,
        wd=jax.random.normal(k3, (hidden_dim, kernel_size), jnp.float32) * 0.1,
        bd=jax.random.normal(k4, (), jnp.float32) * 0.1,
    )


class DecodersBlock:
    def __init__(self, in_channels, hidden_dim, stride,
                 kernel_short_length, kernel_middle_length, kernel_long_length,
                 key):
        ks, km, kl = jax.random.split(key, 3)
        self.stride = stride
        self.p_short = _init_decoder_params(ks, in_channels, hidden_dim, kernel_short_length)
        self.p_middle = _init_decoder_params(km, in_channels, hidden_dim, kernel_middle_length)
        self.p_long = _init_decoder_params(kl, in_channels, hidden_dim, kernel_long_length)

    def __call__(self, convolved, Y1, Y2, Y3):
        return decoders_block(convolved, Y1, Y2, Y3,
                              self.p_short, self.p_middle, self.p_long,
                              self.stride)


def _ref_decoder(x, Y, w1, b1, wd, bd, stride):
    """Pure numpy reference following the PyTorch op definitions exactly (f32)."""
    x, Y = np.asarray(x), np.asarray(Y)
    w1, b1, wd = np.asarray(w1), np.asarray(b1).reshape(-1), np.asarray(wd)
    bd = float(np.asarray(bd))
    M = np.maximum(np.einsum("hc,bct->bht", w1, x) + b1[None, :, None], 0.0)
    Z = Y * M
    B, H, T = Z.shape
    K = wd.shape[1]
    L = (T - 1) * stride + K
    S = np.full((B, L), bd, dtype=np.float32)
    for t in range(T):
        for k in range(K):
            S[:, t * stride + k] += np.einsum("bh,h->b", Z[:, :, t], wd[:, k])
    return S


if __name__ == "__main__":
    B, C_in, H, T = 2, 8, 16, 16
    stride = 2
    k_short, k_middle, k_long = 4, 8, 16

    key = jax.random.PRNGKey(0)
    k_params, k_x, k_y1, k_y2, k_y3 = jax.random.split(key, 5)

    convolved = jax.random.normal(k_x, (B, C_in, T), jnp.float32)
    Y1 = jax.random.normal(k_y1, (B, H, T), jnp.float32)
    Y2 = jax.random.normal(k_y2, (B, H, T), jnp.float32)
    Y3 = jax.random.normal(k_y3, (B, H, T), jnp.float32)

    model = DecodersBlock(C_in, H, stride, k_short, k_middle, k_long, k_params)

    fwd = jax.jit(model.__call__)
    s1, s2, s3 = fwd(convolved, Y1, Y2, Y3)
    jax.block_until_ready((s1, s2, s3))

    # Cross-check against a direct numpy (f32) implementation of the torch
    # semantics.  Inputs/weights are fed to the MXU in bf16 (f32 accumulation),
    # so tolerances are loosened accordingly.
    for s, p, Yx in ((s1, model.p_short, Y1),
                     (s2, model.p_middle, Y2),
                     (s3, model.p_long, Y3)):
        ref = _ref_decoder(convolved, Yx, p["w1"], p["b1"], p["wd"], p["bd"], stride)
        np.testing.assert_allclose(np.asarray(s), ref, rtol=4e-2, atol=4e-2)

    print("KERNEL_OK")
</pallas_src>

<mosaic_0001>
module attributes {stable_mosaic.version = 11 : i64} {
  func.func @_decoders_kernel(%arg0: i32, %arg1: i32, %arg2: memref<1x8x128xbf16, #tpu.memory_space<vmem>>, %arg3: memref<1x16x128xbf16, #tpu.memory_space<vmem>>, %arg4: memref<1x16x128xbf16, #tpu.memory_space<vmem>>, %arg5: memref<1x16x128xbf16, #tpu.memory_space<vmem>>, %arg6: memref<3x16x8xbf16, #tpu.memory_space<vmem>>, %arg7: memref<3x16x1xf32, #tpu.memory_space<vmem>>, %arg8: memref<16x4xbf16, #tpu.memory_space<vmem>>, %arg9: memref<16x8xbf16, #tpu.memory_space<vmem>>, %arg10: memref<16x16xbf16, #tpu.memory_space<vmem>>, %arg11: memref<1x4x128xf32, #tpu.memory_space<vmem>>, %arg12: memref<1x8x128xf32, #tpu.memory_space<vmem>>, %arg13: memref<1x16x128xf32, #tpu.memory_space<vmem>>) attributes {dimension_semantics = [#tpu.dimension_semantics<parallel>, #tpu.dimension_semantics<parallel>], iteration_bounds = array<i64: 2, 1>, scalar_prefetch = 0 : i64, scratch_operands = 0 : i64, tpu.core_type = #tpu.core_type<tc>, window_params = [{transform_indices = @transform_0, window_bounds = array<i64: 1, 8, 128>}, {transform_indices = @transform_1, window_bounds = array<i64: 1, 16, 128>}, {transform_indices = @transform_2, window_bounds = array<i64: 1, 16, 128>}, {transform_indices = @transform_3, window_bounds = array<i64: 1, 16, 128>}, {pipeline_mode = #tpu.pipeline_mode<synchronous>, transform_indices = @transform_4, window_bounds = array<i64: 3, 16, 8>}, {pipeline_mode = #tpu.pipeline_mode<synchronous>, transform_indices = @transform_5, window_bounds = array<i64: 3, 16, 1>}, {pipeline_mode = #tpu.pipeline_mode<synchronous>, transform_indices = @transform_6, window_bounds = array<i64: 16, 4>}, {pipeline_mode = #tpu.pipeline_mode<synchronous>, transform_indices = @transform_7, window_bounds = array<i64: 16, 8>}, {pipeline_mode = #tpu.pipeline_mode<synchronous>, transform_indices = @transform_8, window_bounds = array<i64: 16, 16>}, {transform_indices = @transform_9, window_bounds = array<i64: 1, 4, 128>}, {transform_indices = @transform_10, window_bounds = array<i64: 1, 8, 128>}, {transform_indices = @transform_11, window_bounds = array<i64: 1, 16, 128>}]} {
    %c0 = arith.constant 0 : index
    %c0_0 = arith.constant 0 : index
    %c0_1 = arith.constant 0 : index
    %0 = vector.load %arg2[%c0, %c0_0, %c0_1] : memref<1x8x128xbf16, #tpu.memory_space<vmem>>, vector<1x8x128xbf16>
    %1 = vector.shape_cast %0 : vector<1x8x128xbf16> to vector<8x128xbf16>
    %c0_2 = arith.constant 0 : index
    %c0_3 = arith.constant 0 : index
    %c0_4 = arith.constant 0 : index
    %2 = vector.load %arg6[%c0_2, %c0_3, %c0_4] : memref<3x16x8xbf16, #tpu.memory_space<vmem>>, vector<1x16x8xbf16>
    %3 = vector.shape_cast %2 : vector<1x16x8xbf16> to vector<16x8xbf16>
    %c0_5 = arith.constant 0 : index
    %c0_6 = arith.constant 0 : index
    %c0_7 = arith.constant 0 : index
    %4 = vector.load %arg7[%c0_5, %c0_6, %c0_7] : memref<3x16x1xf32, #tpu.memory_space<vmem>>, vector<1x16x1xf32>
    %5 = vector.shape_cast %4 : vector<1x16x1xf32> to vector<16x1xf32>
    %cst = arith.constant dense<0.000000e+00> : vector<16x128xf32>
    %6 = tpu.matmul %3, %1, %cst {dimension_numbers = #tpu.dot_dimension_numbers<[1], [0], [0], [1], [0, 0, 1, 1], [], []>} : vector<16x8xbf16>, vector<8x128xbf16>, vector<16x128xf32> -> vector<16x128xf32>
    %7 = vector.broadcast %5 : vector<16x1xf32> to vector<16x128xf32>
    %8 = arith.addf %6, %7 : vector<16x128xf32>
    %cst_8 = arith.constant 0.000000e+00 : f32
    %9 = vector.broadcast %cst_8 : f32 to vector<16x128xf32>
    %10 = arith.maximumf %8, %9 : vector<16x128xf32>
    %c0_9 = arith.constant 0 : index
    %c0_10 = arith.constant 0 : index
    %c0_11 = arith.constant 0 : index
    %11 = vector.load %arg3[%c0_9, %c0_10, %c0_11] : memref<1x16x128xbf16, #tpu.memory_space<vmem>>, vector<1x16x128xbf16>
    %12 = vector.shape_cast %11 : vector<1x16x128xbf16> to vector<16x128xbf16>
    %13 = arith.extf %12 : vector<16x128xbf16> to vector<16x128xf32>
    %14 = arith.mulf %13, %10 : vector<16x128xf32>
    %15 = arith.truncf %14 : vector<16x128xf32> to vector<16x128xbf16>
    %c0_12 = arith.constant 0 : index
    %c0_13 = arith.constant 0 : index
    %16 = vector.load %arg8[%c0_12, %c0_13] : memref<16x4xbf16, #tpu.memory_space<vmem>>, vector<16x4xbf16>
    %cst_14 = arith.constant dense<0.000000e+00> : vector<4x128xf32>
    %17 = tpu.matmul %16, %15, %cst_14 {dimension_numbers = #tpu.dot_dimension_numbers<[0], [0], [1], [1], [0, 1, 1, 1], [], []>} : vector<16x4xbf16>, vector<16x128xbf16>, vector<4x128xf32> -> vector<4x128xf32>
    %c0_15 = arith.constant 0 : index
    %c0_16 = arith.constant 0 : index
    %c0_17 = arith.constant 0 : index
    %18 = vector.load %arg11[%c0_15, %c0_16, %c0_17] : memref<1x4x128xf32, #tpu.memory_space<vmem>>, vector<1x4x128xf32>
    %19 = vector.shape_cast %18 : vector<1x4x128xf32> to vector<4x128xf32>
    %20 = vector.shape_cast %17 : vector<4x128xf32> to vector<1x4x128xf32>
    tpu.vector_store %arg11[%c0_15, %c0_16, %c0_17], %20 {strides = array<i32>} : memref<1x4x128xf32, #tpu.memory_space<vmem>>, vector<1x4x128xf32>,
    %c1 = arith.constant 1 : index
    %c0_18 = arith.constant 0 : index
    %c0_19 = arith.constant 0 : index
    %21 = vector.load %arg6[%c1, %c0_18, %c0_19] : memref<3x16x8xbf16, #tpu.memory_space<vmem>>, vector<1x16x8xbf16>
    %22 = vector.shape_cast %21 : vector<1x16x8xbf16> to vector<16x8xbf16>
    %c1_20 = arith.constant 1 : index
    %c0_21 = arith.constant 0 : index
    %c0_22 = arith.constant 0 : index
    %23 = vector.load %arg7[%c1_20, %c0_21, %c0_22] : memref<3x16x1xf32, #tpu.memory_space<vmem>>, vector<1x16x1xf32>
    %24 = vector.shape_cast %23 : vector<1x16x1xf32> to vector<16x1xf32>
    %cst_23 = arith.constant dense<0.000000e+00> : vector<16x128xf32>
    %25 = tpu.matmul %22, %1, %cst_23 {dimension_numbers = #tpu.dot_dimension_numbers<[1], [0], [0], [1], [0, 0, 1, 1], [], []>} : vector<16x8xbf16>, vector<8x128xbf16>, vector<16x128xf32> -> vector<16x128xf32>
    %26 = vector.broadcast %24 : vector<16x1xf32> to vector<16x128xf32>
    %27 = arith.addf %25, %26 : vector<16x128xf32>
    %cst_24 = arith.constant 0.000000e+00 : f32
    %28 = vector.broadcast %cst_24 : f32 to vector<16x128xf32>
    %29 = arith.maximumf %27, %28 : vector<16x128xf32>
    %c0_25 = arith.constant 0 : index
    %c0_26 = arith.constant 0 : index
    %c0_27 = arith.constant 0 : index
    %30 = vector.load %arg4[%c0_25, %c0_26, %c0_27] : memref<1x16x128xbf16, #tpu.memory_space<vmem>>, vector<1x16x128xbf16>
    %31 = vector.shape_cast %30 : vector<1x16x128xbf16> to vector<16x128xbf16>
    %32 = arith.extf %31 : vector<16x128xbf16> to vector<16x128xf32>
    %33 = arith.mulf %32, %29 : vector<16x128xf32>
    %34 = arith.truncf %33 : vector<16x128xf32> to vector<16x128xbf16>
    %c0_28 = arith.constant 0 : index
    %c0_29 = arith.constant 0 : index
    %35 = vector.load %arg9[%c0_28, %c0_29] : memref<16x8xbf16, #tpu.memory_space<vmem>>, vector<16x8xbf16>
    %cst_30 = arith.constant dense<0.000000e+00> : vector<8x128xf32>
    %36 = tpu.matmul %35, %34, %cst_30 {dimension_numbers = #tpu.dot_dimension_numbers<[0], [0], [1], [1], [0, 1, 1, 1], [], []>} : vector<16x8xbf16>, vector<16x128xbf16>, vector<8x128xf32> -> vector<8x128xf32>
    %c0_31 = arith.constant 0 : index
    %c0_32 = arith.constant 0 : index
    %c0_33 = arith.constant 0 : index
    %37 = vector.load %arg12[%c0_31, %c0_32, %c0_33] : memref<1x8x128xf32, #tpu.memory_space<vmem>>, vector<1x8x128xf32>
    %38 = vector.shape_cast %37 : vector<1x8x128xf32> to vector<8x128xf32>
    %39 = vector.shape_cast %36 : vector<8x128xf32> to vector<1x8x128xf32>
    tpu.vector_store %arg12[%c0_31, %c0_32, %c0_33], %39 {strides = array<i32>} : memref<1x8x128xf32, #tpu.memory_space<vmem>>, vector<1x8x128xf32>,
    %c2 = arith.constant 2 : index
    %c0_34 = arith.constant 0 : index
    %c0_35 = arith.constant 0 : index
    %40 = vector.load %arg6[%c2, %c0_34, %c0_35] : memref<3x16x8xbf16, #tpu.memory_space<vmem>>, vector<1x16x8xbf16>
    %41 = vector.shape_cast %40 : vector<1x16x8xbf16> to vector<16x8xbf16>
    %c2_36 = arith.constant 2 : index
    %c0_37 = arith.constant 0 : index
    %c0_38 = arith.constant 0 : index
    %42 = vector.load %arg7[%c2_36, %c0_37, %c0_38] : memref<3x16x1xf32, #tpu.memory_space<vmem>>, vector<1x16x1xf32>
    %43 = vector.shape_cast %42 : vector<1x16x1xf32> to vector<16x1xf32>
    %cst_39 = arith.constant dense<0.000000e+00> : vector<16x128xf32>
    %44 = tpu.matmul %41, %1, %cst_39 {dimension_numbers = #tpu.dot_dimension_numbers<[1], [0], [0], [1], [0, 0, 1, 1], [], []>} : vector<16x8xbf16>, vector<8x128xbf16>, vector<16x128xf32> -> vector<16x128xf32>
    %45 = vector.broadcast %43 : vector<16x1xf32> to vector<16x128xf32>
    %46 = arith.addf %44, %45 : vector<16x128xf32>
    %cst_40 = arith.constant 0.000000e+00 : f32
    %47 = vector.broadcast %cst_40 : f32 to vector<16x128xf32>
    %48 = arith.maximumf %46, %47 : vector<16x128xf32>
    %c0_41 = arith.constant 0 : index
    %c0_42 = arith.constant 0 : index
    %c0_43 = arith.constant 0 : index
    %49 = vector.load %arg5[%c0_41, %c0_42, %c0_43] : memref<1x16x128xbf16, #tpu.memory_space<vmem>>, vector<1x16x128xbf16>
    %50 = vector.shape_cast %49 : vector<1x16x128xbf16> to vector<16x128xbf16>
    %51 = arith.extf %50 : vector<16x128xbf16> to vector<16x128xf32>
    %52 = arith.mulf %51, %48 : vector<16x128xf32>
    %53 = arith.truncf %52 : vector<16x128xf32> to vector<16x128xbf16>
    %c0_44 = arith.constant 0 : index
    %c0_45 = arith.constant 0 : index
    %54 = vector.load %arg10[%c0_44, %c0_45] : memref<16x16xbf16, #tpu.memory_space<vmem>>, vector<16x16xbf16>
    %cst_46 = arith.constant dense<0.000000e+00> : vector<16x128xf32>
    %55 = tpu.matmul %54, %53, %cst_46 {dimension_numbers = #tpu.dot_dimension_numbers<[0], [0], [1], [1], [0, 1, 1, 1], [], []>} : vector<16x16xbf16>, vector<16x128xbf16>, vector<16x128xf32> -> vector<16x128xf32>
    %c0_47 = arith.constant 0 : index
    %c0_48 = arith.constant 0 : index
    %c0_49 = arith.constant 0 : index
    %56 = vector.load %arg13[%c0_47, %c0_48, %c0_49] : memref<1x16x128xf32, #tpu.memory_space<vmem>>, vector<1x16x128xf32>
    %57 = vector.shape_cast %56 : vector<1x16x128xf32> to vector<16x128xf32>
    %58 = vector.shape_cast %55 : vector<16x128xf32> to vector<1x16x128xf32>
    tpu.vector_store %arg13[%c0_47, %c0_48, %c0_49], %58 {strides = array<i32>} : memref<1x16x128xf32, #tpu.memory_space<vmem>>, vector<1x16x128xf32>,
    return
  }
  func.func @transform_0(%arg0: i32, %arg1: i32) -> (i32, i32, i32) {
    %c0_i32 = arith.constant 0 : i32
    %c0_i32_0 = arith.constant 0 : i32
    return %arg0, %c0_i32, %arg1 : i32, i32, i32
  }
  func.func @transform_1(%arg0: i32, %arg1: i32) -> (i32, i32, i32) {
    %c0_i32 = arith.constant 0 : i32
    %c0_i32_0 = arith.constant 0 : i32
    return %arg0, %c0_i32, %arg1 : i32, i32, i32
  }
  func.func @transform_2(%arg0: i32, %arg1: i32) -> (i32, i32, i32) {
    %c0_i32 = arith.constant 0 : i32
    %c0_i32_0 = arith.constant 0 : i32
    return %arg0, %c0_i32, %arg1 : i32, i32, i32
  }
  func.func @transform_3(%arg0: i32, %arg1: i32) -> (i32, i32, i32) {
    %c0_i32 = arith.constant 0 : i32
    %c0_i32_0 = arith.constant 0 : i32
    return %arg0, %c0_i32, %arg1 : i32, i32, i32
  }
  func.func @transform_4(%arg0: i32, %arg1: i32) -> (i32, i32, i32) {
    %c0_i32 = arith.constant 0 : i32
    %c0_i32_0 = arith.constant 0 : i32
    %c0_i32_1 = arith.constant 0 : i32
    %c0_i32_2 = arith.constant 0 : i32
    return %c0_i32, %c0_i32_0, %c0_i32_1 : i32, i32, i32
  }
  func.func @transform_5(%arg0: i32, %arg1: i32) -> (i32, i32, i32) {
    %c0_i32 = arith.constant 0 : i32
    %c0_i32_0 = arith.constant 0 : i32
    %c0_i32_1 = arith.constant 0 : i32
    %c0_i32_2 = arith.constant 0 : i32
    return %c0_i32, %c0_i32_0, %c0_i32_1 : i32, i32, i32
  }
  func.func @transform_6(%arg0: i32, %arg1: i32) -> (i32, i32) {
    %c0_i32 = arith.constant 0 : i32
    %c0_i32_0 = arith.constant 0 : i32
    %c0_i32_1 = arith.constant 0 : i32
    return %c0_i32, %c0_i32_0 : i32, i32
  }
  func.func @transform_7(%arg0: i32, %arg1: i32) -> (i32, i32) {
    %c0_i32 = arith.constant 0 : i32
    %c0_i32_0 = arith.constant 0 : i32
    %c0_i32_1 = arith.constant 0 : i32
    return %c0_i32, %c0_i32_0 : i32, i32
  }
  func.func @transform_8(%arg0: i32, %arg1: i32) -> (i32, i32) {
    %c0_i32 = arith.constant 0 : i32
    %c0_i32_0 = arith.constant 0 : i32
    %c0_i32_1 = arith.constant 0 : i32
    return %c0_i32, %c0_i32_0 : i32, i32
  }
  func.func @transform_9(%arg0: i32, %arg1: i32) -> (i32, i32, i32) {
    %c0_i32 = arith.constant 0 : i32
    %c0_i32_0 = arith.constant 0 : i32
    return %arg0, %c0_i32, %arg1 : i32, i32, i32
  }
  func.func @transform_10(%arg0: i32, %arg1: i32) -> (i32, i32, i32) {
    %c0_i32 = arith.constant 0 : i32
    %c0_i32_0 = arith.constant 0 : i32
    return %arg0, %c0_i32, %arg1 : i32, i32, i32
  }
  func.func @transform_11(%arg0: i32, %arg1: i32) -> (i32, i32, i32) {
    %c0_i32 = arith.constant 0 : i32
    %c0_i32_0 = arith.constant 0 : i32
    return %arg0, %c0_i32, %arg1 : i32, i32, i32
  }
}

</mosaic_0001>

<llo_original>
// kernel: a_call__.1
$region0: #{a_call__.1}
  #allocation0 [shape = 'u32[]', space=smem, size = 0x4, offset = 0x4, fixed_abs, tag = 'smem constant byte address 0x4 - core index']
  #allocation1 [shape = 'u32[144,128]{1,0:T(1,128)}', space=vmem, size = 0x12000, scoped, tag = 'internal scratch']
  %s0 = inlined_call_operand.vmem [shape: bf16[2,8,128], index: 0, kind: input, shape index: {}]
  %s1 = inlined_call_operand.vmem [shape: bf16[2,16,128], index: 1, kind: input, shape index: {}]
  %s2 = inlined_call_operand.vmem [shape: bf16[2,16,128], index: 2, kind: input, shape index: {}]
  %s3 = inlined_call_operand.vmem [shape: bf16[2,16,128], index: 3, kind: input, shape index: {}]
  %s4 = inlined_call_operand.vmem [shape: bf16[3,16,8], index: 4, kind: input, shape index: {}]
  %s5 = inlined_call_operand.vmem [shape: f32[3,16,1], index: 5, kind: input, shape index: {}]
  %s6 = inlined_call_operand.vmem [shape: bf16[16,4], index: 6, kind: input, shape index: {}]
  %s7 = inlined_call_operand.vmem [shape: bf16[16,8], index: 7, kind: input, shape index: {}]
  %s8 = inlined_call_operand.vmem [shape: bf16[16,16], index: 8, kind: input, shape index: {}]
  %s9 = inlined_call_operand.vmem [shape: f32[2,4,128], index: 9, kind: output, shape index: {0}]
  %s10 = inlined_call_operand.vmem [shape: f32[2,8,128], index: 10, kind: output, shape index: {1}]
  %s11 = inlined_call_operand.vmem [shape: f32[2,16,128], index: 11, kind: output, shape index: {2}]
  %12 = xla_tuple %s9, %s10, %s11
  %s13 = sld [smem:[#allocation0]]
  $region85: #{a_call__.1} parent=0
    _
  %s15 = ssub.s32 1, %s13
  %s16 = scalar_select 0, %s15, %s13
  loop: start=0, step=1, limit=4
  $region2: #{a_call__.1} parent=0 // loop_pre_header
    _
  $region3: #{a_call__.1} parent=0 // loop_header
    %s18 = sphi 0, %s22
    %p19 = scmp.ge.s32.totalorder %s18, 4
    %s25 = sphi 0, %s37
    %s26 = sphi 0, %s33
    %s27 = sphi 0, %s25
    %s28 = sphi 0, %s26
    %s29 = sphi 0, %s27
    %s30 = sphi 0, %s28
    %s42 = sphi 0, %s44
    %s45 = sphi 0, %s42
    %s46 = sphi 0, %s45
    %s62 = sphi 0, %s46
    %s70 = sphi 0, %s72
    %s73 = sphi 0, %s70
    %s74 = sphi 0, %s73
    %s90 = sphi 0, %s74
    %s98 = sphi 0, %s100
    %s101 = sphi 0, %s98
    %s102 = sphi 0, %s101
    %s118 = sphi 0, %s102
    %s126 = sphi 0, %s128
    %s129 = sphi 0, %s126
    %s130 = sphi 0, %s129
    %s146 = sphi 0, %s130
    %s150 = sphi 0, %s150
    %s152 = sphi 0, %s150
    %s153 = sphi 0, %s152
    %s167 = sphi 0, %s153
    %s171 = sphi 0, %s171
    %s173 = sphi 0, %s171
    %s174 = sphi 0, %s173
    %s188 = sphi 0, %s174
    %s192 = sphi 0, %s192
    %s194 = sphi 0, %s192
    %s195 = sphi 0, %s194
    %s209 = sphi 0, %s195
    %s213 = sphi 0, %s213
    %s215 = sphi 0, %s213
    %s216 = sphi 0, %s215
    %s230 = sphi 0, %s216
    %s234 = sphi 0, %s234
    %s236 = sphi 0, %s234
    %s237 = sphi 0, %s236
    %s251 = sphi 0, %s237
    %s259 = sphi 0, %s261
    %s262 = sphi 0, %s259
    %s263 = sphi 0, %s262
    %s279 = sphi 0, %s263
    %s287 = sphi 0, %s289
    %s290 = sphi 0, %s287
    %s291 = sphi 0, %s290
    %s307 = sphi 0, %s291
    %s315 = sphi 0, %s317
    %s318 = sphi 0, %s315
    %s319 = sphi 0, %s318
    %s335 = sphi 0, %s319
  $region4: #{a_call__.1} parent=0 // loop_header_branch
    %21 = sbr.rel (%p19) target = $region8
  $region5: #{a_call__.1} parent=0 // loop_body
    %s23 = ssub.s32 %s18, 1
    %s24 = ssub.s32 %s18, 2
    %s31 = sadd.s32 1, %s26
    %p32 = scmp.ge.s32.totalorder %s31, 1
    %s33 = scalar_select %p32, 0, %s31
    %s34 = sadd.s32 1, %s25
    %s35 = scalar_select %p32, %s34, %s25
    %p36 = scmp.ge.s32.totalorder %s35, 2
    %s37 = scalar_select %p36, 0, %s35
    %s38 = ssub.s32 %s25, %s37
    %s39 = ssub.s32 %s26, %s33
    %s40 = sor.u32 %s38, %s39
    %p41 = scmp.eq.s32.totalorder %s40, 0
    %s43 = sadd.s32 %s42, 1
    %s44 = scalar_select %p41, %s42, %s43
    %p47 = pneg %p41
    %p48 = scmp.eq.s32.totalorder %s18, 1
    %p49 = por %p47, %p48
    %p50 = scmp.ne.s32.totalorder %s42, %s45
    %p51 = scmp.eq.s32.totalorder %s18, 0
    %p52 = por %p50, %p51
    %p53 = scmp.ne.s32.totalorder %s42, %s45
    %p54 = scmp.eq.s32.totalorder %s23, 1
    %p55 = por %p53, %p54
    %p56 = scmp.ne.s32.totalorder %s45, %s46
    %p57 = scmp.eq.s32.totalorder %s23, 0
    %p58 = por %p56, %p57
    %p59 = scmp.ne.s32.totalorder %s45, %s46
    %p60 = scmp.eq.s32.totalorder %s24, 1
    %p61 = por %p59, %p60
    %p63 = scmp.ne.s32.totalorder %s46, %s62
    %p64 = scmp.eq.s32.totalorder %s24, 0
    %p65 = por %p63, %p64
    %s66 = ssub.s32 %s25, %s37
    %s67 = ssub.s32 %s26, %s33
    %s68 = sor.u32 %s66, %s67
    %p69 = scmp.eq.s32.totalorder %s68, 0
    %s71 = sadd.s32 %s70, 1
    %s72 = scalar_select %p69, %s70, %s71
    %p75 = pneg %p69
    %p76 = scmp.eq.s32.totalorder %s18, 1
    %p77 = por %p75, %p76
    %p78 = scmp.ne.s32.totalorder %s70, %s73
    %p79 = scmp.eq.s32.totalorder %s18, 0
    %p80 = por %p78, %p79
    %p81 = scmp.ne.s32.totalorder %s70, %s73
    %p82 = scmp.eq.s32.totalorder %s23, 1
    %p83 = por %p81, %p82
    %p84 = scmp.ne.s32.totalorder %s73, %s74
    %p85 = scmp.eq.s32.totalorder %s23, 0
    %p86 = por %p84, %p85
    %p87 = scmp.ne.s32.totalorder %s73, %s74
    %p88 = scmp.eq.s32.totalorder %s24, 1
    %p89 = por %p87, %p88
    %p91 = scmp.ne.s32.totalorder %s74, %s90
    %p92 = scmp.eq.s32.totalorder %s24, 0
    %p93 = por %p91, %p92
    %s94 = ssub.s32 %s25, %s37
    %s95 = ssub.s32 %s26, %s33
    %s96 = sor.u32 %s94, %s95
    %p97 = scmp.eq.s32.totalorder %s96, 0
    %s99 = sadd.s32 %s98, 1
    %s100 = scalar_select %p97, %s98, %s99
    %p103 = pneg %p97
    %p104 = scmp.eq.s32.totalorder %s18, 1
    %p105 = por %p103, %p104
    %p106 = scmp.ne.s32.totalorder %s98, %s101
    %p107 = scmp.eq.s32.totalorder %s18, 0
    %p108 = por %p106, %p107
    %p109 = scmp.ne.s32.totalorder %s98, %s101
    %p110 = scmp.eq.s32.totalorder %s23, 1
    %p111 = por %p109, %p110
    %p112 = scmp.ne.s32.totalorder %s101, %s102
    %p113 = scmp.eq.s32.totalorder %s23, 0
    %p114 = por %p112, %p113
    %p115 = scmp.ne.s32.totalorder %s101, %s102
    %p116 = scmp.eq.s32.totalorder %s24, 1
    %p117 = por %p115, %p116
    %p119 = scmp.ne.s32.totalorder %s102, %s118
    %p120 = scmp.eq.s32.totalorder %s24, 0
    %p121 = por %p119, %p120
    %s122 = ssub.s32 %s25, %s37
    %s123 = ssub.s32 %s26, %s33
    %s124 = sor.u32 %s122, %s123
    %p125 = scmp.eq.s32.totalorder %s124, 0
    %s127 = sadd.s32 %s126, 1
    %s128 = scalar_select %p125, %s126, %s127
    %p131 = pneg %p125
    %p132 = scmp.eq.s32.totalorder %s18, 1
    %p133 = por %p131, %p132
    %p134 = scmp.ne.s32.totalorder %s126, %s129
    %p135 = scmp.eq.s32.totalorder %s18, 0
    %p136 = por %p134, %p135
    %p137 = scmp.ne.s32.totalorder %s126, %s129
    %p138 = scmp.eq.s32.totalorder %s23, 1
    %p139 = por %p137, %p138
    %p140 = scmp.ne.s32.totalorder %s129, %s130
    %p141 = scmp.eq.s32.totalorder %s23, 0
    %p142 = por %p140, %p141
    %p143 = scmp.ne.s32.totalorder %s129, %s130
    %p144 = scmp.eq.s32.totalorder %s24, 1
    %p145 = por %p143, %p144
    %p147 = scmp.ne.s32.totalorder %s130, %s146
    %p148 = scmp.eq.s32.totalorder %s24, 0
    %p149 = por %p147, %p148
    %s151 = sadd.s32 %s150, 1
    %p154 = scmp.eq.s32.totalorder %s18, 1
    %p155 = scmp.ne.s32.totalorder %s150, %s152
    %p156 = scmp.eq.s32.totalorder %s18, 0
    %p157 = por %p155, %p156
    %p158 = scmp.ne.s32.totalorder %s150, %s152
    %p159 = scmp.eq.s32.totalorder %s23, 1
    %p160 = por %p158, %p159
    %p161 = scmp.ne.s32.totalorder %s152, %s153
    %p162 = scmp.eq.s32.totalorder %s23, 0
    %p163 = por %p161, %p162
    %p164 = scmp.ne.s32.totalorder %s152, %s153
    %p165 = scmp.eq.s32.totalorder %s24, 1
    %p166 = por %p164, %p165
    %p168 = scmp.ne.s32.totalorder %s153, %s167
    %p169 = scmp.eq.s32.totalorder %s24, 0
    %p170 = por %p168, %p169
    %s172 = sadd.s32 %s171, 1
    %p175 = scmp.eq.s32.totalorder %s18, 1
    %p176 = scmp.ne.s32.totalorder %s171, %s173
    %p177 = scmp.eq.s32.totalorder %s18, 0
    %p178 = por %p176, %p177
    %p179 = scmp.ne.s32.totalorder %s171, %s173
    %p180 = scmp.eq.s32.totalorder %s23, 1
    %p181 = por %p179, %p180
    %p182 = scmp.ne.s32.totalorder %s173, %s174
    %p183 = scmp.eq.s32.totalorder %s23, 0
    %p184 = por %p182, %p183
    %p185 = scmp.ne.s32.totalorder %s173, %s174
    %p186 = scmp.eq.s32.totalorder %s24, 1
    %p187 = por %p185, %p186
    %p189 = scmp.ne.s32.totalorder %s174, %s188
    %p190 = scmp.eq.s32.totalorder %s24, 0
    %p191 = por %p189, %p190
    %s193 = sadd.s32 %s192, 1
    %p196 = scmp.eq.s32.totalorder %s18, 1
    %p197 = scmp.ne.s32.totalorder %s192, %s194
    %p198 = scmp.eq.s32.totalorder %s18, 0
    %p199 = por %p197, %p198
    %p200 = scmp.ne.s32.totalorder %s192, %s194
    %p201 = scmp.eq.s32.totalorder %s23, 1
    %p202 = por %p200, %p201
    %p203 = scmp.ne.s32.totalorder %s194, %s195
    %p204 = scmp.eq.s32.totalorder %s23, 0
    %p205 = por %p203, %p204
    %p206 = scmp.ne.s32.totalorder %s194, %s195
    %p207 = scmp.eq.s32.totalorder %s24, 1
    %p208 = por %p206, %p207
    %p210 = scmp.ne.s32.totalorder %s195, %s209
    %p211 = scmp.eq.s32.totalorder %s24, 0
    %p212 = por %p210, %p211
    %s214 = sadd.s32 %s213, 1
    %p217 = scmp.eq.s32.totalorder %s18, 1
    %p218 = scmp.ne.s32.totalorder %s213, %s215
    %p219 = scmp.eq.s32.totalorder %s18, 0
    %p220 = por %p218, %p219
    %p221 = scmp.ne.s32.totalorder %s213, %s215
    %p222 = scmp.eq.s32.totalorder %s23, 1
    %p223 = por %p221, %p222
    %p224 = scmp.ne.s32.totalorder %s215, %s216
    %p225 = scmp.eq.s32.totalorder %s23, 0
    %p226 = por %p224, %p225
    %p227 = scmp.ne.s32.totalorder %s215, %s216
    %p228 = scmp.eq.s32.totalorder %s24, 1
    %p229 = por %p227, %p228
    %p231 = scmp.ne.s32.totalorder %s216, %s230
    %p232 = scmp.eq.s32.totalorder %s24, 0
    %p233 = por %p231, %p232
    %s235 = sadd.s32 %s234, 1
    %p238 = scmp.eq.s32.totalorder %s18, 1
    %p239 = scmp.ne.s32.totalorder %s234, %s236
    %p240 = scmp.eq.s32.totalorder %s18, 0
    %p241 = por %p239, %p240
    %p242 = scmp.ne.s32.totalorder %s234, %s236
    %p243 = scmp.eq.s32.totalorder %s23, 1
    %p244 = por %p242, %p243
    %p245 = scmp.ne.s32.totalorder %s236, %s237
    %p246 = scmp.eq.s32.totalorder %s23, 0
    %p247 = por %p245, %p246
    %p248 = scmp.ne.s32.totalorder %s236, %s237
    %p249 = scmp.eq.s32.totalorder %s24, 1
    %p250 = por %p248, %p249
    %p252 = scmp.ne.s32.totalorder %s237, %s251
    %p253 = scmp.eq.s32.totalorder %s24, 0
    %p254 = por %p252, %p253
    %s255 = ssub.s32 %s25, %s37
    %s256 = ssub.s32 %s26, %s33
    %s257 = sor.u32 %s255, %s256
    %p258 = scmp.eq.s32.totalorder %s257, 0
    %s260 = sadd.s32 %s259, 1
    %s261 = scalar_select %p258, %s259, %s260
    %p264 = pneg %p258
    %p265 = scmp.eq.s32.totalorder %s18, 1
    %p266 = por %p264, %p265
    %p267 = scmp.ne.s32.totalorder %s259, %s262
    %p268 = scmp.eq.s32.totalorder %s18, 0
    %p269 = por %p267, %p268
    %p270 = scmp.ne.s32.totalorder %s259, %s262
    %p271 = scmp.eq.s32.totalorder %s23, 1
    %p272 = por %p270, %p271
    %p273 = scmp.ne.s32.totalorder %s262, %s263
    %p274 = scmp.eq.s32.totalorder %s23, 0
    %p275 = por %p273, %p274
    %p276 = scmp.ne.s32.totalorder %s262, %s263
    %p277 = scmp.eq.s32.totalorder %s24, 1
    %p278 = por %p276, %p277
    %p280 = scmp.ne.s32.totalorder %s263, %s279
    %p281 = scmp.eq.s32.totalorder %s24, 0
    %p282 = por %p280, %p281
    %s283 = ssub.s32 %s25, %s37
    %s284 = ssub.s32 %s26, %s33
    %s285 = sor.u32 %s283, %s284
    %p286 = scmp.eq.s32.totalorder %s285, 0
    %s288 = sadd.s32 %s287, 1
    %s289 = scalar_select %p286, %s287, %s288
    %p292 = pneg %p286
    %p293 = scmp.eq.s32.totalorder %s18, 1
    %p294 = por %p292, %p293
    %p295 = scmp.ne.s32.totalorder %s287, %s290
    %p296 = scmp.eq.s32.totalorder %s18, 0
    %p297 = por %p295, %p296
    %p298 = scmp.ne.s32.totalorder %s287, %s290
    %p299 = scmp.eq.s32.totalorder %s23, 1
    %p300 = por %p298, %p299
    %p301 = scmp.ne.s32.totalorder %s290, %s291
    %p302 = scmp.eq.s32.totalorder %s23, 0
    %p303 = por %p301, %p302
    %p304 = scmp.ne.s32.totalorder %s290, %s291
    %p305 = scmp.eq.s32.totalorder %s24, 1
    %p306 = por %p304, %p305
    %p308 = scmp.ne.s32.totalorder %s291, %s307
    %p309 = scmp.eq.s32.totalorder %s24, 0
    %p310 = por %p308, %p309
    %s311 = ssub.s32 %s25, %s37
    %s312 = ssub.s32 %s26, %s33
    %s313 = sor.u32 %s311, %s312
    %p314 = scmp.eq.s32.totalorder %s313, 0
    %s316 = sadd.s32 %s315, 1
    %s317 = scalar_select %p314, %s315, %s316
    %p320 = pneg %p314
    %p321 = scmp.eq.s32.totalorder %s18, 1
    %p322 = por %p320, %p321
    %p323 = scmp.ne.s32.totalorder %s315, %s318
    %p324 = scmp.eq.s32.totalorder %s18, 0
    %p325 = por %p323, %p324
    %p326 = scmp.ne.s32.totalorder %s315, %s318
    %p327 = scmp.eq.s32.totalorder %s23, 1
    %p328 = por %p326, %p327
    %p329 = scmp.ne.s32.totalorder %s318, %s319
    %p330 = scmp.eq.s32.totalorder %s23, 0
    %p331 = por %p329, %p330
    %p332 = scmp.ne.s32.totalorder %s318, %s319
    %p333 = scmp.eq.s32.totalorder %s24, 1
    %p334 = por %p332, %p333
    %p336 = scmp.ne.s32.totalorder %s319, %s335
    %p337 = scmp.eq.s32.totalorder %s24, 0
    %p338 = por %p336, %p337
    %p339 = scmp.le.s32.totalorder 1, %s18
    %p340 = scmp.lt.s32.totalorder %s18, 3
    %p341 = pnand %p339, %p340
    %p342 = pneg %p341
    // Predicated region
    $region9: #{a_call__.1} parent=5 // pred_check
      _
    $region10: #{a_call__.1} parent=5 // pred_check_branch
      %344 = sbr.rel (%p341) target = $region12
    $region11: #{a_call__.1} parent=5 // pred_region
      %s345 = ssub.s32 %s18, 1
      // Predicated region
      $region13: #{a_call__.1} parent=11 // pred_check
        %p346 = pneg %p163
      $region14: #{a_call__.1} parent=11 // pred_check_branch
        %348 = sbr.rel (%p346) target = $region16
      $region15: #{a_call__.1} parent=11 // pred_region
        _
      $region16: #{a_call__.1} parent=11 // pred_fallthru
        _
      // Predicated region
      $region17: #{a_call__.1} parent=11 // pred_check
        %p349 = pneg %p184
      $region18: #{a_call__.1} parent=11 // pred_check_branch
        %351 = sbr.rel (%p349) target = $region20
      $region19: #{a_call__.1} parent=11 // pred_region
        _
      $region20: #{a_call__.1} parent=11 // pred_fallthru
        _
      // Predicated region
      $region21: #{a_call__.1} parent=11 // pred_check
        %p352 = pneg %p205
      $region22: #{a_call__.1} parent=11 // pred_check_branch
        %354 = sbr.rel (%p352) target = $region24
      $region23: #{a_call__.1} parent=11 // pred_region
        _
      $region24: #{a_call__.1} parent=11 // pred_fallthru
        _
      // Predicated region
      $region25: #{a_call__.1} parent=11 // pred_check
        %p355 = pneg %p226
      $region26: #{a_call__.1} parent=11 // pred_check_branch
        %357 = sbr.rel (%p355) target = $region28
      $region27: #{a_call__.1} parent=11 // pred_region
        _
      $region28: #{a_call__.1} parent=11 // pred_fallthru
        _
      // Predicated region
      $region29: #{a_call__.1} parent=11 // pred_check
        %p358 = pneg %p247
      $region30: #{a_call__.1} parent=11 // pred_check_branch
        %360 = sbr.rel (%p358) target = $region32
      $region31: #{a_call__.1} parent=11 // pred_region
        _
      $region32: #{a_call__.1} parent=11 // pred_fallthru
        _
    $region12: #{a_call__.1} parent=5 // pred_fallthru
      _
    %p361 = scmp.lt.s32.totalorder %s18, 2
    // Predicated region
    $region33: #{a_call__.1} parent=5 // pred_check
      %p362 = pneg %p361
    $region34: #{a_call__.1} parent=5 // pred_check_branch
      %364 = sbr.rel (%p362) target = $region36
    $region35: #{a_call__.1} parent=5 // pred_region
      // Predicated region
      $region37: #{a_call__.1} parent=35 // pred_check
        %p365 = pneg %p52
      $region38: #{a_call__.1} parent=35 // pred_check_branch
        %367 = sbr.rel (%p365) target = $region40
      $region39: #{a_call__.1} parent=35 // pred_region
        %p368 = scmp.lt.s32.totalorder %s25, 1
        %s369 = scalar_select %p368, %s25, 1
        %p370 = scmp.lt.s32.totalorder %s26, 0
        %s371 = scalar_select %p370, %s26, 0
        %s372 = sadd.s32 %s371, %s369
        %s373 = smul.addr %s372, 4
        %s374 = scalar_lea.vmem %s0, %s373
      $region40: #{a_call__.1} parent=35 // pred_fallthru
        _
      // Predicated region
      $region41: #{a_call__.1} parent=35 // pred_check
        %p375 = pneg %p80
      $region42: #{a_call__.1} parent=35 // pred_check_branch
        %377 = sbr.rel (%p375) target = $region44
      $region43: #{a_call__.1} parent=35 // pred_region
        %p378 = scmp.lt.s32.totalorder %s25, 1
        %s379 = scalar_select %p378, %s25, 1
        %p380 = scmp.lt.s32.totalorder %s26, 0
        %s381 = scalar_select %p380, %s26, 0
        %s382 = smul.addr %s379, 2
        %s383 = sadd.s32 %s381, %s382
        %s384 = smul.addr %s383, 4
        %s385 = scalar_lea.vmem %s1, %s384
      $region44: #{a_call__.1} parent=35 // pred_fallthru
        _
      // Predicated region
      $region45: #{a_call__.1} parent=35 // pred_check
        %p386 = pneg %p108
      $region46: #{a_call__.1} parent=35 // pred_check_branch
        %388 = sbr.rel (%p386) target = $region48
      $region47: #{a_call__.1} parent=35 // pred_region
        %p389 = scmp.lt.s32.totalorder %s25, 1
        %s390 = scalar_select %p389, %s25, 1
        %p391 = scmp.lt.s32.totalorder %s26, 0
        %s392 = scalar_select %p391, %s26, 0
        %s393 = smul.addr %s390, 2
        %s394 = sadd.s32 %s392, %s393
        %s395 = smul.addr %s394, 4
        %s396 = scalar_lea.vmem %s2, %s395
      $region48: #{a_call__.1} parent=35 // pred_fallthru
        _
      // Predicated region
      $region49: #{a_call__.1} parent=35 // pred_check
        %p397 = pneg %p136
      $region50: #{a_call__.1} parent=35 // pred_check_branch
        %399 = sbr.rel (%p397) target = $region52
      $region51: #{a_call__.1} parent=35 // pred_region
        %p400 = scmp.lt.s32.totalorder %s25, 1
        %s401 = scalar_select %p400, %s25, 1
        %p402 = scmp.lt.s32.totalorder %s26, 0
        %s403 = scalar_select %p402, %s26, 0
        %s404 = smul.addr %s401, 2
        %s405 = sadd.s32 %s403, %s404
        %s406 = smul.addr %s405, 4
        %s407 = scalar_lea.vmem %s3, %s406
      $region52: #{a_call__.1} parent=35 // pred_fallthru
        _
    $region36: #{a_call__.1} parent=5 // pred_fallthru
      _
    %p408 = scmp.le.s32.totalorder 1, %s18
    %p409 = scmp.lt.s32.totalorder %s18, 3
    %p410 = pnand %p408, %p409
    %p411 = pneg %p410
    // Predicated region
    $region53: #{a_call__.1} parent=5 // pred_check
      _
    $region54: #{a_call__.1} parent=5 // pred_check_branch
      %413 = sbr.rel (%p410) target = $region56
    $region55: #{a_call__.1} parent=5 // pred_region
      %s414 = ssub.s32 %s18, 1
      %p415 = scmp.lt.s32.totalorder %s27, 1
      %s416 = scalar_select %p415, %s27, 1
      %p417 = scmp.lt.s32.totalorder %s28, 0
      %s418 = scalar_select %p417, %s28, 0
      %s419 = sadd.s32 %s418, %s416
      %s420 = smul.addr %s419, 4
      %s421 = scalar_lea.vmem %s0, %s420
      %p422 = pneg %p58
      %p423 = pneg %p55
      %p424 = scmp.lt.s32.totalorder %s27, 1
      %s425 = scalar_select %p424, %s27, 1
      %p426 = scmp.lt.s32.totalorder %s28, 0
      %s427 = scalar_select %p426, %s28, 0
      %s428 = smul.addr %s425, 2
      %s429 = sadd.s32 %s427, %s428
      %s430 = smul.addr %s429, 4
      %s431 = scalar_lea.vmem %s1, %s430
      %p432 = pneg %p86
      %p433 = pneg %p83
      %p434 = scmp.lt.s32.totalorder %s27, 1
      %s435 = scalar_select %p434, %s27, 1
      %p436 = scmp.lt.s32.totalorder %s28, 0
      %s437 = scalar_select %p436, %s28, 0
      %s438 = smul.addr %s435, 2
      %s439 = sadd.s32 %s437, %s438
      %s440 = smul.addr %s439, 4
      %s441 = scalar_lea.vmem %s2, %s440
      %p442 = pneg %p114
      %p443 = pneg %p111
      %p444 = scmp.lt.s32.totalorder %s27, 1
      %s445 = scalar_select %p444, %s27, 1
      %p446 = scmp.lt.s32.totalorder %s28, 0
      %s447 = scalar_select %p446, %s28, 0
      %s448 = smul.addr %s445, 2
      %s449 = sadd.s32 %s447, %s448
      %s450 = smul.addr %s449, 4
      %s451 = scalar_lea.vmem %s3, %s450
      %p452 = pneg %p142
      %p453 = pneg %p139
      %p454 = pneg %p163
      %p455 = pneg %p160
      %p456 = pneg %p184
      %p457 = pneg %p181
      %p458 = pneg %p205
      %p459 = pneg %p202
      %p460 = pneg %p226
      %p461 = pneg %p223
      %p462 = pneg %p247
      %p463 = pneg %p244
      %p464 = pneg %p275
      %p465 = pneg %p272
      %p466 = scmp.lt.s32.totalorder %s27, 1
      %s467 = scalar_select %p466, %s27, 1
      %p468 = scmp.lt.s32.totalorder %s28, 0
      %s469 = scalar_select %p468, %s28, 0
      %s470 = sadd.s32 %s469, %s467
      %s471 = smul.addr %s470, 4
      %s472 = scalar_lea.vmem %s9, %s471
      %p473 = pneg %p303
      %p474 = pneg %p300
      %p475 = scmp.lt.s32.totalorder %s27, 1
      %s476 = scalar_select %p475, %s27, 1
      %p477 = scmp.lt.s32.totalorder %s28, 0
      %s478 = scalar_select %p477, %s28, 0
      %s479 = sadd.s32 %s478, %s476
      %s480 = smul.addr %s479, 8
      %s481 = scalar_lea.vmem %s10, %s480
      %p482 = pneg %p331
      %p483 = pneg %p328
      %p484 = scmp.lt.s32.totalorder %s27, 1
      %s485 = scalar_select %p484, %s27, 1
      %p486 = scmp.lt.s32.totalorder %s28, 0
      %s487 = scalar_select %p486, %s28, 0
      %s488 = smul.addr %s485, 2
      %s489 = sadd.s32 %s487, %s488
      %s490 = smul.addr %s489, 8
      %s491 = scalar_lea.vmem %s11, %s490
      %p492 = scmp.lt.s32.totalorder %s27, 1
      %s493 = scalar_select %p492, %s27, 1
      %p494 = scmp.lt.s32.totalorder %s28, 0
      %s495 = scalar_select %p494, %s28, 0
      %s496 = sadd.s32 %s495, %s493
      %s497 = smul.addr %s496, 4
      %s498 = scalar_lea.vmem %s0, %s497
      %p499 = scmp.lt.s32.totalorder %s27, 1
      %s500 = scalar_select %p499, %s27, 1
      %p501 = scmp.lt.s32.totalorder %s28, 0
      %s502 = scalar_select %p501, %s28, 0
      %s503 = smul.addr %s500, 2
      %s504 = sadd.s32 %s502, %s503
      %s505 = smul.addr %s504, 4
      %s506 = scalar_lea.vmem %s1, %s505
      %p507 = scmp.lt.s32.totalorder %s27, 1
      %s508 = scalar_select %p507, %s27, 1
      %p509 = scmp.lt.s32.totalorder %s28, 0
      %s510 = scalar_select %p509, %s28, 0
      %s511 = smul.addr %s508, 2
      %s512 = sadd.s32 %s510, %s511
      %s513 = smul.addr %s512, 4
      %s514 = scalar_lea.vmem %s2, %s513
      %p515 = scmp.lt.s32.totalorder %s27, 1
      %s516 = scalar_select %p515, %s27, 1
      %p517 = scmp.lt.s32.totalorder %s28, 0
      %s518 = scalar_select %p517, %s28, 0
      %s519 = smul.addr %s516, 2
      %s520 = sadd.s32 %s518, %s519
      %s521 = smul.addr %s520, 4
      %s522 = scalar_lea.vmem %s3, %s521
      %p523 = scmp.lt.s32.totalorder %s27, 1
      %s524 = scalar_select %p523, %s27, 1
      %p525 = scmp.lt.s32.totalorder %s28, 0
      %s526 = scalar_select %p525, %s28, 0
      %s527 = sadd.s32 %s526, %s524
      %s528 = smul.addr %s527, 4
      %s529 = scalar_lea.vmem %s9, %s528
      %p530 = scmp.lt.s32.totalorder %s27, 1
      %s531 = scalar_select %p530, %s27, 1
      %p532 = scmp.lt.s32.totalorder %s28, 0
      %s533 = scalar_select %p532, %s28, 0
      %s534 = sadd.s32 %s533, %s531
      %s535 = smul.addr %s534, 8
      %s536 = scalar_lea.vmem %s10, %s535
      %p537 = scmp.lt.s32.totalorder %s27, 1
      %s538 = scalar_select %p537, %s27, 1
      %p539 = scmp.lt.s32.totalorder %s28, 0
      %s540 = scalar_select %p539, %s28, 0
      %s541 = smul.addr %s538, 2
      %s542 = sadd.s32 %s540, %s541
      %s543 = smul.addr %s542, 8
      %s544 = scalar_lea.vmem %s11, %s543
      %v546 = vld [vmem:[%s498] sm:$0xf]
      %v547 = vld [vmem:[%s4] sm:$0xf]
      %v548 = vld [vmem:[%s4 + $0x4] sm:$0xf]
      %v549 = vld [vmem:[%s5] sm:$0xff]
      %v550 = vld [vmem:[%s5 + $0x8] sm:$0xff]
      %552 = vset.pattern.permute.xlu0 0
      %553 = vperm.xlu0 %552, %v549
      %v554 = vpop.permute.xlu0 %553
      %557 = vset.pattern.permute.xlu0 0
      %558 = vperm.xlu0 %557, %v550
      %v559 = vpop.permute.xlu0 %558
      %v563 = vunpack.c.l.b16 %v547
      %v564 = vunpack.c.l.b16 %v548
      %v565 = vpack.c.b16 %v564, %v563
      %vm566 = vcmask 64512
      %v568 = vsel %vm566, %v565, 0
      %vm570 = vcmask 1043456
      %v572 = vsel %vm570, %v546, 0
      %574 = vmatprep.subr.bf16.mxu0 0
      %575 = vmatpush1.bf16.msra.mxu0 %v572
      %576 = vmatprep.subr.bf16.mxu0 0
      %577 = vmatpush1.bf16.msra.mxu0 0
      %578 = vmatprep.subr.bf16.mxu0 0
      %579 = vmatpush1.bf16.msra.mxu0 0
      %580 = vmatprep.subr.bf16.mxu0 0
      %581 = vmatpush1.bf16.msra.mxu0 0
      %582 = vmatprep.subr.bf16.mxu0 0
      %583 = vmatpush1.bf16.msra.mxu0 0
      %584 = vmatprep.subr.bf16.mxu0 0
      %585 = vmatpush1.bf16.msra.mxu0 0
      %586 = vmatprep.subr.bf16.mxu0 0
      %587 = vmatpush1.bf16.msra.mxu0 0
      %588 = vmatprep.subr.bf16.mxu0 0
      %589 = vmatpush1.bf16.msra.mxu0 0
      %590 = vmatprep.subr.bf16.mxu0 0
      %591 = vmatpush1.bf16.msra.mxu0 0
      %592 = vmatprep.subr.bf16.mxu0 0
      %593 = vmatpush1.bf16.msra.mxu0 0
      %594 = vmatprep.subr.bf16.mxu0 0
      %595 = vmatpush1.bf16.msra.mxu0 0
      %596 = vmatprep.subr.bf16.mxu0 0
      %597 = vmatpush1.bf16.msra.mxu0 0
      %598 = vmatprep.subr.bf16.mxu0 0
      %599 = vmatpush1.bf16.msra.mxu0 0
      %600 = vmatprep.subr.bf16.mxu0 0
      %601 = vmatpush1.bf16.msra.mxu0 0
      %602 = vmatprep.subr.bf16.mxu0 0
      %603 = vmatpush1.bf16.msra.mxu0 0
      %604 = vmatprep.subr.bf16.mxu0 0
      %605 = vmatpush1.bf16.msra.mxu0 0
      %606 = vmatprep.mubr.bf16.mxu0 0
      %607 = vmatmul.mubr.bf16.gmra.mrb[0].mxu0 %v568
      %v608 = vpop.f32.mrb[0].mxu0
      %v609 = vadd.f32 %v554, %v608
      %v610 = vpop.f32.mrb[0].mxu0
      %v611 = vpop.f32.mrb[0].mxu0
      %v612 = vadd.f32 %v559, %v611
      %v613 = vpop.f32.mrb[0].mxu0
      %614 = vdwg.mxu0
      %v615 = vmax.f32 %v609, 0.0
      %v616 = vmax.f32 %v612, 0.0
      %v617 = vld [vmem:[%s506] sm:$0xf]
      %v618 = vld [vmem:[%s506 + $0x4] sm:$0xf]
      %v619 = vunpack.c.l.bf16 %v617
      %v620 = vunpack.c.l.bf16 %v618
      %v621 = vmul.f32 %v619, %v615
      %v622 = vmul.f32 %v620, %v616
      %v623 = vpack.c.bf16 %v622, %v621
      %v624 = vld [vmem:[%s6] sm:$0xf]
      %v625 = vld [vmem:[%s6 + $0x4] sm:$0xf]
      %v628 = vunpack.c.l.b16 %v624
      %v629 = vunpack.c.l.b16 %v625
      %v630 = vpack.c.b16 %v629, %v628
      %632 = vxpose.xlu0.c.b16.start [1/8] %v630, 128
      %633 = vxpose.xlu0.c.b16.cont [2/8] 0, 128
      %634 = vxpose.xlu0.c.b16.cont [3/8] 0, 128
      %635 = vxpose.xlu0.c.b16.cont [4/8] 0, 128
      %636 = vxpose.xlu0.c.b16.cont [5/8] 0, 128
      %637 = vxpose.xlu0.c.b16.cont [6/8] 0, 128
      %638 = vxpose.xlu0.c.b16.cont [7/8] 0, 128
      %639 = vxpose.xlu0.c.b16.end [8/8] 0, 128
      %v640 = vpop.trf.xlu0
      %v641 = vpop.trf.xlu0
      %v642 = vpop.trf.xlu0
      %v643 = vpop.trf.xlu0
      %v644 = vpop.trf.xlu0
      %v645 = vpop.trf.xlu0
      %v646 = vpop.trf.xlu0
      %v647 = vpop.trf.xlu0
      %vm648 = vcmask 130048
      %v650 = vsel %vm648, %v640, 0
      %652 = vmatprep.subr.bf16.mxu0 0
      %653 = vmatpush1.bf16.msra.mxu0 %v623
      %654 = vmatprep.subr.bf16.mxu0 0
      %655 = vmatpush1.bf16.msra.mxu0 0
      %656 = vmatprep.subr.bf16.mxu0 0
      %657 = vmatpush1.bf16.msra.mxu0 0
      %658 = vmatprep.subr.bf16.mxu0 0
      %659 = vmatpush1.bf16.msra.mxu0 0
      %660 = vmatprep.subr.bf16.mxu0 0
      %661 = vmatpush1.bf16.msra.mxu0 0
      %662 = vmatprep.subr.bf16.mxu0 0
      %663 = vmatpush1.bf16.msra.mxu0 0
      %664 = vmatprep.subr.bf16.mxu0 0
      %665 = vmatpush1.bf16.msra.mxu0 0
      %666 = vmatprep.subr.bf16.mxu0 0
      %667 = vmatpush1.bf16.msra.mxu0 0
      %668 = vmatprep.subr.bf16.mxu0 0
      %669 = vmatpush1.bf16.msra.mxu0 0
      %670 = vmatprep.subr.bf16.mxu0 0
      %671 = vmatpush1.bf16.msra.mxu0 0
      %672 = vmatprep.subr.bf16.mxu0 0
      %673 = vmatpush1.bf16.msra.mxu0 0
      %674 = vmatprep.subr.bf16.mxu0 0
      %675 = vmatpush1.bf16.msra.mxu0 0
      %676 = vmatprep.subr.bf16.mxu0 0
      %677 = vmatpush1.bf16.msra.mxu0 0
      %678 = vmatprep.subr.bf16.mxu0 0
      %679 = vmatpush1.bf16.msra.mxu0 0
      %680 = vmatprep.subr.bf16.mxu0 0
      %681 = vmatpush1.bf16.msra.mxu0 0
      %682 = vmatprep.subr.bf16.mxu0 0
      %683 = vmatpush1.bf16.msra.mxu0 0
      %684 = vmatprep.mubr.bf16.mxu0 0
      %685 = vmatmul.mubr.bf16.gmra.mrb[0].mxu0 %v650
      %v686 = vpop.f32.mrb[0].mxu0
      %v687 = vadd.f32 0.0, %v686
      %v688 = vpop.f32.mrb[0].mxu0
      %v689 = vpop.f32.mrb[0].mxu0
      %v690 = vpop.f32.mrb[0].mxu0
      %691 = vdwg.mxu0
      %692 = vst [vmem:[%s529] sm:$0xf] %v687
      %s693 = scalar_lea.vmem %s4, 8
      %v694 = vld [vmem:[%s693] sm:$0xf]
      %v695 = vld [vmem:[%s693 + $0x4] sm:$0xf]
      %s696 = scalar_lea.vmem %s5, 16
      %v697 = vld [vmem:[%s696] sm:$0xff]
      %v698 = vld [vmem:[%s696 + $0x8] sm:$0xff]
      %700 = vset.pattern.permute.xlu0 0
      %701 = vperm.xlu0 %700, %v697
      %v702 = vpop.permute.xlu0 %701
      %705 = vset.pattern.permute.xlu0 0
      %706 = vperm.xlu0 %705, %v698
      %v707 = vpop.permute.xlu0 %706
      %v711 = vunpack.c.l.b16 %v694
      %v712 = vunpack.c.l.b16 %v695
      %v713 = vpack.c.b16 %v712, %v711
      %v715 = vsel %vm566, %v713, 0
      %717 = vmatprep.subr.bf16.mxu0 0
      %718 = vmatpush1.bf16.msra.mxu0 %v572
      %719 = vmatprep.subr.bf16.mxu0 0
      %720 = vmatpush1.bf16.msra.mxu0 0
      %721 = vmatprep.subr.bf16.mxu0 0
      %722 = vmatpush1.bf16.msra.mxu0 0
      %723 = vmatprep.subr.bf16.mxu0 0
      %724 = vmatpush1.bf16.msra.mxu0 0
      %725 = vmatprep.subr.bf16.mxu0 0
      %726 = vmatpush1.bf16.msra.mxu0 0
      %727 = vmatprep.subr.bf16.mxu0 0
      %728 = vmatpush1.bf16.msra.mxu0 0
      %729 = vmatprep.subr.bf16.mxu0 0
      %730 = vmatpush1.bf16.msra.mxu0 0
      %731 = vmatprep.subr.bf16.mxu0 0
      %732 = vmatpush1.bf16.msra.mxu0 0
      %733 = vmatprep.subr.bf16.mxu0 0
      %734 = vmatpush1.bf16.msra.mxu0 0
      %735 = vmatprep.subr.bf16.mxu0 0
      %736 = vmatpush1.bf16.msra.mxu0 0
      %737 = vmatprep.subr.bf16.mxu0 0
      %738 = vmatpush1.bf16.msra.mxu0 0
      %739 = vmatprep.subr.bf16.mxu0 0
      %740 = vmatpush1.bf16.msra.mxu0 0
      %741 = vmatprep.subr.bf16.mxu0 0
      %742 = vmatpush1.bf16.msra.mxu0 0
      %743 = vmatprep.subr.bf16.mxu0 0
      %744 = vmatpush1.bf16.msra.mxu0 0
      %745 = vmatprep.subr.bf16.mxu0 0
      %746 = vmatpush1.bf16.msra.mxu0 0
      %747 = vmatprep.subr.bf16.mxu0 0
      %748 = vmatpush1.bf16.msra.mxu0 0
      %749 = vmatprep.mubr.bf16.mxu0 0
      %750 = vmatmul.mubr.bf16.gmra.mrb[0].mxu0 %v715
      %v751 = vpop.f32.mrb[0].mxu0
      %v752 = vadd.f32 %v702, %v751
      %v753 = vpop.f32.mrb[0].mxu0
      %v754 = vpop.f32.mrb[0].mxu0
      %v755 = vadd.f32 %v707, %v754
      %v756 = vpop.f32.mrb[0].mxu0
      %757 = vdwg.mxu0
      %v758 = vmax.f32 %v752, 0.0
      %v759 = vmax.f32 %v755, 0.0
      %v760 = vld [vmem:[%s514] sm:$0xf]
      %v761 = vld [vmem:[%s514 + $0x4] sm:$0xf]
      %v762 = vunpack.c.l.bf16 %v760
      %v763 = vunpack.c.l.bf16 %v761
      %v764 = vmul.f32 %v762, %v758
      %v765 = vmul.f32 %v763, %v759
      %v766 = vpack.c.bf16 %v765, %v764
      %v767 = vld [vmem:[%s7] sm:$0xf]
      %v768 = vld [vmem:[%s7 + $0x4] sm:$0xf]
      %v771 = vunpack.c.l.b16 %v767
      %v772 = vunpack.c.l.b16 %v768
      %v773 = vpack.c.b16 %v772, %v771
      %775 = vxpose.xlu0.c.b16.start [1/8] %v773, 128
      %776 = vxpose.xlu0.c.b16.cont [2/8] 0, 128
      %777 = vxpose.xlu0.c.b16.cont [3/8] 0, 128
      %778 = vxpose.xlu0.c.b16.cont [4/8] 0, 128
      %779 = vxpose.xlu0.c.b16.cont [5/8] 0, 128
      %780 = vxpose.xlu0.c.b16.cont [6/8] 0, 128
      %781 = vxpose.xlu0.c.b16.cont [7/8] 0, 128
      %782 = vxpose.xlu0.c.b16.end [8/8] 0, 128
      %v783 = vpop.trf.xlu0
      %v784 = vpop.trf.xlu0
      %v785 = vpop.trf.xlu0
      %v786 = vpop.trf.xlu0
      %v787 = vpop.trf.xlu0
      %v788 = vpop.trf.xlu0
      %v789 = vpop.trf.xlu0
      %v790 = vpop.trf.xlu0
      %v792 = vsel %vm648, %v783, 0
      %794 = vmatprep.subr.bf16.mxu0 0
      %795 = vmatpush1.bf16.msra.mxu0 %v766
      %796 = vmatprep.subr.bf16.mxu0 0
      %797 = vmatpush1.bf16.msra.mxu0 0
      %798 = vmatprep.subr.bf16.mxu0 0
      %799 = vmatpush1.bf16.msra.mxu0 0
      %800 = vmatprep.subr.bf16.mxu0 0
      %801 = vmatpush1.bf16.msra.mxu0 0
      %802 = vmatprep.subr.bf16.mxu0 0
      %803 = vmatpush1.bf16.msra.mxu0 0
      %804 = vmatprep.subr.bf16.mxu0 0
      %805 = vmatpush1.bf16.msra.mxu0 0
      %806 = vmatprep.subr.bf16.mxu0 0
      %807 = vmatpush1.bf16.msra.mxu0 0
      %808 = vmatprep.subr.bf16.mxu0 0
      %809 = vmatpush1.bf16.msra.mxu0 0
      %810 = vmatprep.subr.bf16.mxu0 0
      %811 = vmatpush1.bf16.msra.mxu0 0
      %812 = vmatprep.subr.bf16.mxu0 0
      %813 = vmatpush1.bf16.msra.mxu0 0
      %814 = vmatprep.subr.bf16.mxu0 0
      %815 = vmatpush1.bf16.msra.mxu0 0
      %816 = vmatprep.subr.bf16.mxu0 0
      %817 = vmatpush1.bf16.msra.mxu0 0
      %818 = vmatprep.subr.bf16.mxu0 0
      %819 = vmatpush1.bf16.msra.mxu0 0
      %820 = vmatprep.subr.bf16.mxu0 0
      %821 = vmatpush1.bf16.msra.mxu0 0
      %822 = vmatprep.subr.bf16.mxu0 0
      %823 = vmatpush1.bf16.msra.mxu0 0
      %824 = vmatprep.subr.bf16.mxu0 0
      %825 = vmatpush1.bf16.msra.mxu0 0
      %826 = vmatprep.mubr.bf16.mxu0 0
      %827 = vmatmul.mubr.bf16.gmra.mrb[0].mxu0 %v792
      %v828 = vpop.f32.mrb[0].mxu0
      %v829 = vadd.f32 0.0, %v828
      %v830 = vpop.f32.mrb[0].mxu0
      %v831 = vpop.f32.mrb[0].mxu0
      %v832 = vpop.f32.mrb[0].mxu0
      %833 = vdwg.mxu0
      %834 = vst [vmem:[%s536] sm:$0xff] %v829
      %s835 = scalar_lea.vmem %s4, 16
      %v836 = vld [vmem:[%s835] sm:$0xf]
      %v837 = vld [vmem:[%s835 + $0x4] sm:$0xf]
      %s838 = scalar_lea.vmem %s5, 32
      %v839 = vld [vmem:[%s838] sm:$0xff]
      %v840 = vld [vmem:[%s838 + $0x8] sm:$0xff]
      %842 = vset.pattern.permute.xlu0 0
      %843 = vperm.xlu0 %842, %v839
      %v844 = vpop.permute.xlu0 %843
      %847 = vset.pattern.permute.xlu0 0
      %848 = vperm.xlu0 %847, %v840
      %v849 = vpop.permute.xlu0 %848
      %v853 = vunpack.c.l.b16 %v836
      %v854 = vunpack.c.l.b16 %v837
      %v855 = vpack.c.b16 %v854, %v853
      %v857 = vsel %vm566, %v855, 0
      %859 = vmatprep.subr.bf16.mxu0 0
      %860 = vmatpush1.bf16.msra.mxu0 %v572
      %861 = vmatprep.subr.bf16.mxu0 0
      %862 = vmatpush1.bf16.msra.mxu0 0
      %863 = vmatprep.subr.bf16.mxu0 0
      %864 = vmatpush1.bf16.msra.mxu0 0
      %865 = vmatprep.subr.bf16.mxu0 0
      %866 = vmatpush1.bf16.msra.mxu0 0
      %867 = vmatprep.subr.bf16.mxu0 0
      %868 = vmatpush1.bf16.msra.mxu0 0
      %869 = vmatprep.subr.bf16.mxu0 0
      %870 = vmatpush1.bf16.msra.mxu0 0
      %871 = vmatprep.subr.bf16.mxu0 0
      %872 = vmatpush1.bf16.msra.mxu0 0
      %873 = vmatprep.subr.bf16.mxu0 0
      %874 = vmatpush1.bf16.msra.mxu0 0
      %875 = vmatprep.subr.bf16.mxu0 0
      %876 = vmatpush1.bf16.msra.mxu0 0
      %877 = vmatprep.subr.bf16.mxu0 0
      %878 = vmatpush1.bf16.msra.mxu0 0
      %879 = vmatprep.subr.bf16.mxu0 0
      %880 = vmatpush1.bf16.msra.mxu0 0
      %881 = vmatprep.subr.bf16.mxu0 0
      %882 = vmatpush1.bf16.msra.mxu0 0
      %883 = vmatprep.subr.bf16.mxu0 0
      %884 = vmatpush1.bf16.msra.mxu0 0
      %885 = vmatprep.subr.bf16.mxu0 0
      %886 = vmatpush1.bf16.msra.mxu0 0
      %887 = vmatprep.subr.bf16.mxu0 0
      %888 = vmatpush1.bf16.msra.mxu0 0
      %889 = vmatprep.subr.bf16.mxu0 0
      %890 = vmatpush1.bf16.msra.mxu0 0
      %891 = vmatprep.mubr.bf16.mxu0 0
      %892 = vmatmul.mubr.bf16.gmra.mrb[0].mxu0 %v857
      %v893 = vpop.f32.mrb[0].mxu0
      %v894 = vadd.f32 %v844, %v893
      %v895 = vpop.f32.mrb[0].mxu0
      %v896 = vpop.f32.mrb[0].mxu0
      %v897 = vadd.f32 %v849, %v896
      %v898 = vpop.f32.mrb[0].mxu0
      %899 = vdwg.mxu0
      %v900 = vmax.f32 %v894, 0.0
      %v901 = vmax.f32 %v897, 0.0
      %v902 = vld [vmem:[%s522] sm:$0xf]
      %v903 = vld [vmem:[%s522 + $0x4] sm:$0xf]
      %v904 = vunpack.c.l.bf16 %v902
      %v905 = vunpack.c.l.bf16 %v903
      %v906 = vmul.f32 %v904, %v900
      %v907 = vmul.f32 %v905, %v901
      %v908 = vpack.c.bf16 %v907, %v906
      %v909 = vld [vmem:[%s8] sm:$0xf]
      %v910 = vld [vmem:[%s8 + $0x4] sm:$0xf]
      %v913 = vunpack.c.l.b16 %v909
      %v914 = vunpack.c.l.b16 %v910
      %v915 = vpack.c.b16 %v914, %v913
      %917 = vxpose.xlu0.c.b16.start [1/8] %v915, 128
      %918 = vxpose.xlu0.c.b16.cont [2/8] 0, 128
      %919 = vxpose.xlu0.c.b16.cont [3/8] 0, 128
      %920 = vxpose.xlu0.c.b16.cont [4/8] 0, 128
      %921 = vxpose.xlu0.c.b16.cont [5/8] 0, 128
      %922 = vxpose.xlu0.c.b16.cont [6/8] 0, 128
      %923 = vxpose.xlu0.c.b16.cont [7/8] 0, 128
      %924 = vxpose.xlu0.c.b16.end [8/8] 0, 128
      %v925 = vpop.trf.xlu0
      %v926 = vpop.trf.xlu0
      %v927 = vpop.trf.xlu0
      %v928 = vpop.trf.xlu0
      %v929 = vpop.trf.xlu0
      %v930 = vpop.trf.xlu0
      %v931 = vpop.trf.xlu0
      %v932 = vpop.trf.xlu0
      %v934 = vsel %vm648, %v925, 0
      %936 = vmatprep.subr.bf16.mxu0 0
      %937 = vmatpush1.bf16.msra.mxu0 %v908
      %938 = vmatprep.subr.bf16.mxu0 0
      %939 = vmatpush1.bf16.msra.mxu0 0
      %940 = vmatprep.subr.bf16.mxu0 0
      %941 = vmatpush1.bf16.msra.mxu0 0
      %942 = vmatprep.subr.bf16.mxu0 0
      %943 = vmatpush1.bf16.msra.mxu0 0
      %944 = vmatprep.subr.bf16.mxu0 0
      %945 = vmatpush1.bf16.msra.mxu0 0
      %946 = vmatprep.subr.bf16.mxu0 0
      %947 = vmatpush1.bf16.msra.mxu0 0
      %948 = vmatprep.subr.bf16.mxu0 0
      %949 = vmatpush1.bf16.msra.mxu0 0
      %950 = vmatprep.subr.bf16.mxu0 0
      %951 = vmatpush1.bf16.msra.mxu0 0
      %952 = vmatprep.subr.bf16.mxu0 0
      %953 = vmatpush1.bf16.msra.mxu0 0
      %954 = vmatprep.subr.bf16.mxu0 0
      %955 = vmatpush1.bf16.msra.mxu0 0
      %956 = vmatprep.subr.bf16.mxu0 0
      %957 = vmatpush1.bf16.msra.mxu0 0
      %958 = vmatprep.subr.bf16.mxu0 0
      %959 = vmatpush1.bf16.msra.mxu0 0
      %960 = vmatprep.subr.bf16.mxu0 0
      %961 = vmatpush1.bf16.msra.mxu0 0
      %962 = vmatprep.subr.bf16.mxu0 0
      %963 = vmatpush1.bf16.msra.mxu0 0
      %964 = vmatprep.subr.bf16.mxu0 0
      %965 = vmatpush1.bf16.msra.mxu0 0
      %966 = vmatprep.subr.bf16.mxu0 0
      %967 = vmatpush1.bf16.msra.mxu0 0
      %968 = vmatprep.mubr.bf16.mxu0 0
      %969 = vmatmul.mubr.bf16.gmra.mrb[0].mxu0 %v934
      %v970 = vpop.f32.mrb[0].mxu0
      %v971 = vadd.f32 0.0, %v970
      %v972 = vpop.f32.mrb[0].mxu0
      %v973 = vpop.f32.mrb[0].mxu0
      %v974 = vadd.f32 0.0, %v973
      %v975 = vpop.f32.mrb[0].mxu0
      %976 = vdwg.mxu0
      %977 = vst [vmem:[%s544] sm:$0xff] %v971
      %978 = vst [vmem:[%s544 + $0x8] sm:$0xff] %v974
      %p979 = scmp.lt.s32.totalorder %s27, 1
      %s980 = scalar_select %p979, %s27, 1
      %p981 = scmp.lt.s32.totalorder %s28, 0
      %s982 = scalar_select %p981, %s28, 0
      %s983 = sadd.s32 %s982, %s980
      %s984 = smul.addr %s983, 4
      %s985 = scalar_lea.vmem %s9, %s984
      %p986 = scmp.lt.s32.totalorder %s27, 1
      %s987 = scalar_select %p986, %s27, 1
      %p988 = scmp.lt.s32.totalorder %s28, 0
      %s989 = scalar_select %p988, %s28, 0
      %s990 = sadd.s32 %s989, %s987
      %s991 = smul.addr %s990, 8
      %s992 = scalar_lea.vmem %s10, %s991
      %p993 = scmp.lt.s32.totalorder %s27, 1
      %s994 = scalar_select %p993, %s27, 1
      %p995 = scmp.lt.s32.totalorder %s28, 0
      %s996 = scalar_select %p995, %s28, 0
      %s997 = smul.addr %s994, 2
      %s998 = sadd.s32 %s996, %s997
      %s999 = smul.addr %s998, 8
      %s1000 = scalar_lea.vmem %s11, %s999
      // Predicated region
      $region57: #{a_call__.1} parent=55 // pred_check
        %p1001 = pneg %p272
      $region58: #{a_call__.1} parent=55 // pred_check_branch
        %1003 = sbr.rel (%p1001) target = $region60
      $region59: #{a_call__.1} parent=55 // pred_region
        _
      $region60: #{a_call__.1} parent=55 // pred_fallthru
        _
      // Predicated region
      $region61: #{a_call__.1} parent=55 // pred_check
        %p1004 = pneg %p300
      $region62: #{a_call__.1} parent=55 // pred_check_branch
        %1006 = sbr.rel (%p1004) target = $region64
      $region63: #{a_call__.1} parent=55 // pred_region
        _
      $region64: #{a_call__.1} parent=55 // pred_fallthru
        _
      // Predicated region
      $region65: #{a_call__.1} parent=55 // pred_check
        %p1007 = pneg %p328
      $region66: #{a_call__.1} parent=55 // pred_check_branch
        %1009 = sbr.rel (%p1007) target = $region68
      $region67: #{a_call__.1} parent=55 // pred_region
        _
      $region68: #{a_call__.1} parent=55 // pred_fallthru
        _
    $region56: #{a_call__.1} parent=5 // pred_fallthru
      _
    %p1010 = scmp.le.s32.totalorder 2, %s18
    // Predicated region
    $region69: #{a_call__.1} parent=5 // pred_check
      %p1011 = pneg %p1010
    $region70: #{a_call__.1} parent=5 // pred_check_branch
      %1013 = sbr.rel (%p1011) target = $region72
    $region71: #{a_call__.1} parent=5 // pred_region
      %s1014 = ssub.s32 %s18, 2
      // Predicated region
      $region73: #{a_call__.1} parent=71 // pred_check
        %p1015 = pneg %p278
      $region74: #{a_call__.1} parent=71 // pred_check_branch
        %1017 = sbr.rel (%p1015) target = $region76
      $region75: #{a_call__.1} parent=71 // pred_region
        %p1018 = scmp.lt.s32.totalorder %s29, 1
        %s1019 = scalar_select %p1018, %s29, 1
        %p1020 = scmp.lt.s32.totalorder %s30, 0
        %s1021 = scalar_select %p1020, %s30, 0
        %s1022 = sadd.s32 %s1021, %s1019
        %s1023 = smul.addr %s1022, 4
        %s1024 = scalar_lea.vmem %s9, %s1023
      $region76: #{a_call__.1} parent=71 // pred_fallthru
        _
      // Predicated region
      $region77: #{a_call__.1} parent=71 // pred_check
        %p1025 = pneg %p306
      $region78: #{a_call__.1} parent=71 // pred_check_branch
        %1027 = sbr.rel (%p1025) target = $region80
      $region79: #{a_call__.1} parent=71 // pred_region
        %p1028 = scmp.lt.s32.totalorder %s29, 1
        %s1029 = scalar_select %p1028, %s29, 1
        %p1030 = scmp.lt.s32.totalorder %s30, 0
        %s1031 = scalar_select %p1030, %s30, 0
        %s1032 = sadd.s32 %s1031, %s1029
        %s1033 = smul.addr %s1032, 8
        %s1034 = scalar_lea.vmem %s10, %s1033
      $region80: #{a_call__.1} parent=71 // pred_fallthru
        _
      // Predicated region
      $region81: #{a_call__.1} parent=71 // pred_check
        %p1035 = pneg %p334
      $region82: #{a_call__.1} parent=71 // pred_check_branch
        %1037 = sbr.rel (%p1035) target = $region84
      $region83: #{a_call__.1} parent=71 // pred_region
        %p1038 = scmp.lt.s32.totalorder %s29, 1
        %s1039 = scalar_select %p1038, %s29, 1
        %p1040 = scmp.lt.s32.totalorder %s30, 0
        %s1041 = scalar_select %p1040, %s30, 0
        %s1042 = smul.addr %s1039, 2
        %s1043 = sadd.s32 %s1041, %s1042
        %s1044 = smul.addr %s1043, 8
        %s1045 = scalar_lea.vmem %s11, %s1044
      $region84: #{a_call__.1} parent=71 // pred_fallthru
        _
    $region72: #{a_call__.1} parent=5 // pred_fallthru
      _
  $region6: #{a_call__.1} parent=0 // loop_footer
    %s22 = sadd.s32 1, %s18
  $region7: #{a_call__.1} parent=0 // loop_footer_branch
    %17 = sbr.rel target = $region3
  $region8: #{a_call__.1} parent=0 // loop_exit
    _

</llo_original>
